<compile_context>
chip_gen: v7x
topology: tpu7x:2x2x1
jax: 0.10.0
libtpu: 0.0.40
codegen_flags: <defaults>
</compile_context>

<pallas_src>
import functools
import math

import jax
import jax.numpy as jnp
from jax.experimental import pallas as pl
from jax.experimental.pallas import tpu as pltpu


_TARGET_BLOCK_BYTES = 2 * 1024 * 1024    # ~2 MiB per block (safe on v5e/v6e/v7x)
_VMEM_LIMIT_BYTES = 32 * 1024 * 1024     # explicit scoped-VMEM cap; < v7x physical


def _round_up(x, m):
    return ((x + m - 1) // m) * m


def _round_down_min(x, m):
    return max(m, (x // m) * m)


# ----------------------------- channels_last -----------------------------

def _ln_last_kernel(x_ref, w_ref, b_ref, o_ref, *, eps, C, k):
    # x_ref/o_ref: (tile_r, k*C); w_ref/b_ref: (1, C).
    # Each lane-dense row holds k independent normalization groups of length C.
    w = w_ref[...].astype(jnp.float32)
    b = b_ref[...].astype(jnp.float32)
    inv_C = 1.0 / C
    for j in range(k):                      # k is a small static constant (<= 8)
        lo = j * C
        seg = x_ref[:, lo:lo + C].astype(jnp.float32)
        s1 = jnp.sum(seg, axis=-1, keepdims=True)
        s2 = jnp.sum(seg * seg, axis=-1, keepdims=True)
        mean = s1 * inv_C
        var = jnp.maximum(s2 * inv_C - mean * mean, 0.0)
        inv = jax.lax.rsqrt(var + eps)
        y = (seg - mean) * inv * w + b
        o_ref[:, lo:lo + C] = y.astype(o_ref.dtype)


def layer_norm_channels_last(x, weight, bias, eps=1e-6):
    """x: (..., C); weight, bias: (C,)."""
    orig_shape = x.shape
    C = orig_shape[-1]
    M = 1
    for d in orig_shape[:-1]:
        M *= d
    itemsize = jnp.dtype(x.dtype).itemsize

    # Lane packing: fold k rows into one lane-dense row when C < 128.
    k = 1
    if C < 128:
        kk = 128 // math.gcd(C, 128)        # smallest k with (k*C) % 128 == 0
        if kk <= 8 and M % kk == 0:
            k = kk
    L = k * C
    R = M // k
    x2 = x.reshape(R, L)                    # contiguous collapse -> free reshape

    # Byte-budget row tile (~2 MiB input block), multiple of 8 sublanes.
    row_bytes = L * itemsize
    tile_r = _round_down_min(_TARGET_BLOCK_BYTES // max(row_bytes, 1), 8)
    tile_r = min(tile_r, _round_up(R, 8))
    # Keep >= 2 grid steps when possible (v7x megacore sharding + pipelining).
    if pl.cdiv(R, tile_r) < 2 and R > 8:
        tile_r = max(8, _round_up(pl.cdiv(R, 2), 8))
    grid_r = pl.cdiv(R, tile_r)

    w2 = weight.reshape(1, C)
    b2 = bias.reshape(1, C)

    cost = pl.CostEstimate(
        flops=8 * M * C,
        transcendentals=M,
        bytes_accessed=2 * M * C * itemsize + 2 * C * 4,
    )

    out = pl.pallas_call(
        functools.partial(_ln_last_kernel, eps=eps, C=C, k=k),
        out_shape=jax.ShapeDtypeStruct((R, L), x.dtype),
        grid_spec=pltpu.PrefetchScalarGridSpec(
            num_scalar_prefetch=0,
            grid=(grid_r,),
            in_specs=[
                pl.BlockSpec((tile_r, L), lambda i: (i, 0)),
                pl.BlockSpec((1, C), lambda i: (0, 0)),
                pl.BlockSpec((1, C), lambda i: (0, 0)),
            ],
            out_specs=pl.BlockSpec((tile_r, L), lambda i: (i, 0)),
        ),
        compiler_params=pltpu.CompilerParams(
            dimension_semantics=("parallel",),
            vmem_limit_bytes=_VMEM_LIMIT_BYTES,
        ),
        cost_estimate=cost,
    )(x2, w2, b2)
    return out.reshape(orig_shape)


# ----------------------------- channels_first -----------------------------

def _ln_first_kernel(x_ref, w_ref, b_ref, o_ref, *, eps, C):
    # x_ref/o_ref: (tile_n, C, tile_hw); w_ref/b_ref: (1, C, 1)
    x = x_ref[...].astype(jnp.float32)
    inv_C = 1.0 / C
    s1 = jnp.sum(x, axis=1, keepdims=True)
    s2 = jnp.sum(x * x, axis=1, keepdims=True)
    mean = s1 * inv_C
    var = jnp.maximum(s2 * inv_C - mean * mean, 0.0)
    y = (x - mean) * jax.lax.rsqrt(var + eps)
    y = w_ref[...].astype(jnp.float32) * y + b_ref[...].astype(jnp.float32)
    o_ref[...] = y.astype(o_ref.dtype)


def layer_norm_channels_first(x, weight, bias, eps=1e-6):
    """x: (N, C, H, W); weight, bias: (C,)."""
    N, C, H, W = x.shape
    HW = H * W
    itemsize = jnp.dtype(x.dtype).itemsize
    x3 = x.reshape(N, C, HW)

    # Lane tile over HW (multiple of 128, or full HW when small).
    if HW <= 512:
        tile_hw = HW
    else:
        budget_lanes = _TARGET_BLOCK_BYTES // max(C * itemsize, 1)
        tile_hw = _round_down_min(budget_lanes, 128)
        tile_hw = min(tile_hw, _round_up(HW, 128))

    # Block the batch dim too so small-HW stages still get large blocks.
    block_bytes = C * tile_hw * itemsize
    tile_n = max(1, min(N, _TARGET_BLOCK_BYTES // max(block_bytes, 1)))

    # Keep >= 2 grid steps when possible (v7x megacore sharding + pipelining).
    if pl.cdiv(N, tile_n) * pl.cdiv(HW, tile_hw) < 2:
        if N > 1:
            tile_n = pl.cdiv(N, 2)
        elif HW > 256 and tile_hw > 128:
            tile_hw = max(128, _round_up(pl.cdiv(HW, 2), 128))

    grid = (pl.cdiv(N, tile_n), pl.cdiv(HW, tile_hw))

    w3 = weight.reshape(1, C, 1)
    b3 = bias.reshape(1, C, 1)

    cost = pl.CostEstimate(
        flops=8 * N * C * HW,
        transcendentals=N * HW,
        bytes_accessed=2 * N * C * HW * itemsize + 2 * C * 4,
    )

    out = pl.pallas_call(
        functools.partial(_ln_first_kernel, eps=eps, C=C),
        out_shape=jax.ShapeDtypeStruct((N, C, HW), x.dtype),
        grid_spec=pltpu.PrefetchScalarGridSpec(
            num_scalar_prefetch=0,
            grid=grid,
            in_specs=[
                pl.BlockSpec((tile_n, C, tile_hw), lambda n, j: (n, 0, j)),
                pl.BlockSpec((1, C, 1), lambda n, j: (0, 0, 0)),
                pl.BlockSpec((1, C, 1), lambda n, j: (0, 0, 0)),
            ],
            out_specs=pl.BlockSpec((tile_n, C, tile_hw), lambda n, j: (n, 0, j)),
        ),
        compiler_params=pltpu.CompilerParams(
            dimension_semantics=("parallel", "parallel"),
            vmem_limit_bytes=_VMEM_LIMIT_BYTES,
        ),
        cost_estimate=cost,
    )(x3, w3, b3)
    return out.reshape(N, C, H, W)


# ----------------------------- module wrapper -----------------------------

class LayerNorm:
    def __init__(self, normalized_shape, eps=1e-6, data_format='channels_last',
                 weight=None, bias=None):
        if data_format not in ['channels_last', 'channels_first']:
            raise NotImplementedError
        self.eps = eps
        self.data_format = data_format
        C = normalized_shape
        self.weight = jnp.ones((C,), jnp.float32) if weight is None else weight
        self.bias = jnp.zeros((C,), jnp.float32) if bias is None else bias

    def __call__(self, x):
        if self.data_format == 'channels_last':
            return layer_norm_channels_last(x, self.weight, self.bias, self.eps)
        else:
            return layer_norm_channels_first(x, self.weight, self.bias, self.eps)


# ----------------------------- reference (plain JAX) -----------------------------

def _ref_last(x, w, b, eps):
    mean = jnp.mean(x, axis=-1, keepdims=True)
    var = jnp.mean((x - mean) ** 2, axis=-1, keepdims=True)
    return (x - mean) / jnp.sqrt(var + eps) * w + b


def _ref_first(x, w, b, eps):
    u = jnp.mean(x, axis=1, keepdims=True)
    s = jnp.mean((x - u) ** 2, axis=1, keepdims=True)
    y = (x - u) / jnp.sqrt(s + eps)
    return w[None, :, None, None] * y + b[None, :, None, None]


if __name__ == "__main__":
    key = jax.random.PRNGKey(0)
    k1, k2, k3, k4, k5, k6 = jax.random.split(key, 6)

    eps = 1e-6
    N, C, H, W = 2, 32, 16, 16

    # deterministic synthetic parameters (shape per module __init__: (C,))
    weight = 1.0 + 0.1 * jax.random.normal(k3, (C,), jnp.float32)
    bias = 0.1 * jax.random.normal(k4, (C,), jnp.float32)

    # --- channels_first: NCHW input ---
    x_cf = jax.random.normal(k1, (N, C, H, W), jnp.float32)
    ln_cf = LayerNorm(C, eps=eps, data_format='channels_first',
                      weight=weight, bias=bias)
    out_cf = jax.block_until_ready(ln_cf(x_cf))
    ref_cf = _ref_first(x_cf, weight, bias, eps)
    assert out_cf.shape == x_cf.shape and out_cf.dtype == x_cf.dtype
    assert jnp.allclose(out_cf, ref_cf, atol=1e-4, rtol=1e-4)

    # --- channels_last: NHWC input (exercises the lane-packed k*C=128 path) ---
    x_cl = jax.random.normal(k2, (N, H, W, C), jnp.float32)
    ln_cl = LayerNorm(C, eps=eps, data_format='channels_last',
                      weight=weight, bias=bias)
    out_cl = jax.block_until_ready(ln_cl(x_cl))
    ref_cl = _ref_last(x_cl, weight, bias, eps)
    assert out_cl.shape == x_cl.shape and out_cl.dtype == x_cl.dtype
    assert jnp.allclose(out_cl, ref_cl, atol=1e-4, rtol=1e-4)

    # --- odd shapes: exercise cdiv grids with padded tail blocks ---
    x_cf2 = jax.random.normal(k5, (3, C, 7, 7), jnp.float32)
    out_cf2 = jax.block_until_ready(ln_cf(x_cf2))
    assert jnp.allclose(out_cf2, _ref_first(x_cf2, weight, bias, eps),
                        atol=1e-4, rtol=1e-4)

    x_cl2 = jax.random.normal(k6, (3, 5, 7, C), jnp.float32)
    out_cl2 = jax.block_until_ready(ln_cl(x_cl2))
    assert jnp.allclose(out_cl2, _ref_last(x_cl2, weight, bias, eps),
                        atol=1e-4, rtol=1e-4)

    print("KERNEL_OK")
</pallas_src>

<mosaic_0001>
module attributes {stable_mosaic.version = 11 : i64} {
  func.func @_ln_first_kernel(%arg0: i32, %arg1: i32, %arg2: memref<1x32x256xf32, #tpu.memory_space<vmem>>, %arg3: memref<1x32x1xf32, #tpu.memory_space<vmem>>, %arg4: memref<1x32x1xf32, #tpu.memory_space<vmem>>, %arg5: memref<1x32x256xf32, #tpu.memory_space<vmem>>) attributes {dimension_semantics = [#tpu.dimension_semantics<parallel>, #tpu.dimension_semantics<parallel>], iteration_bounds = array<i64: 2, 1>, scalar_prefetch = 0 : i64, scratch_operands = 0 : i64, tpu.core_type = #tpu.core_type<tc>, window_params = [{transform_indices = @transform_0, window_bounds = array<i64: 1, 32, 256>}, {pipeline_mode = #tpu.pipeline_mode<synchronous>, transform_indices = @transform_1, window_bounds = array<i64: 1, 32, 1>}, {pipeline_mode = #tpu.pipeline_mode<synchronous>, transform_indices = @transform_2, window_bounds = array<i64: 1, 32, 1>}, {transform_indices = @transform_3, window_bounds = array<i64: 1, 32, 256>}]} {
    %c0 = arith.constant 0 : index
    %c0_0 = arith.constant 0 : index
    %c0_1 = arith.constant 0 : index
    %0 = vector.load %arg2[%c0, %c0_0, %c0_1] : memref<1x32x256xf32, #tpu.memory_space<vmem>>, vector<1x32x256xf32>
    %cst = arith.constant dense<0.000000e+00> : vector<1x256xf32>
    %1 = vector.multi_reduction <add>, %0, %cst [1] : vector<1x32x256xf32> to vector<1x256xf32>
    %2 = vector.shape_cast %1 : vector<1x256xf32> to vector<1x1x256xf32>
    %3 = arith.mulf %0, %0 : vector<1x32x256xf32>
    %cst_2 = arith.constant dense<0.000000e+00> : vector<1x256xf32>
    %4 = vector.multi_reduction <add>, %3, %cst_2 [1] : vector<1x32x256xf32> to vector<1x256xf32>
    %5 = vector.shape_cast %4 : vector<1x256xf32> to vector<1x1x256xf32>
    %cst_3 = arith.constant 3.125000e-02 : f32
    %6 = vector.broadcast %cst_3 : f32 to vector<1x1x256xf32>
    %7 = arith.mulf %2, %6 : vector<1x1x256xf32>
    %cst_4 = arith.constant 3.125000e-02 : f32
    %8 = vector.broadcast %cst_4 : f32 to vector<1x1x256xf32>
    %9 = arith.mulf %5, %8 : vector<1x1x256xf32>
    %10 = arith.mulf %7, %7 : vector<1x1x256xf32>
    %11 = arith.subf %9, %10 : vector<1x1x256xf32>
    %cst_5 = arith.constant 0.000000e+00 : f32
    %12 = vector.broadcast %cst_5 : f32 to vector<1x1x256xf32>
    %13 = arith.maximumf %11, %12 : vector<1x1x256xf32>
    %14 = vector.broadcast %7 : vector<1x1x256xf32> to vector<1x32x256xf32>
    %15 = arith.subf %0, %14 : vector<1x32x256xf32>
    %cst_6 = arith.constant 9.99999997E-7 : f32
    %16 = vector.broadcast %cst_6 : f32 to vector<1x1x256xf32>
    %17 = arith.addf %13, %16 : vector<1x1x256xf32>
    %18 = math.rsqrt %17 : vector<1x1x256xf32>
    %19 = vector.broadcast %18 : vector<1x1x256xf32> to vector<1x32x256xf32>
    %20 = arith.mulf %15, %19 : vector<1x32x256xf32>
    %c0_7 = arith.constant 0 : index
    %c0_8 = arith.constant 0 : index
    %c0_9 = arith.constant 0 : index
    %21 = vector.load %arg3[%c0_7, %c0_8, %c0_9] : memref<1x32x1xf32, #tpu.memory_space<vmem>>, vector<1x32x1xf32>
    %22 = vector.broadcast %21 : vector<1x32x1xf32> to vector<1x32x256xf32>
    %23 = arith.mulf %22, %20 : vector<1x32x256xf32>
    %c0_10 = arith.constant 0 : index
    %c0_11 = arith.constant 0 : index
    %c0_12 = arith.constant 0 : index
    %24 = vector.load %arg4[%c0_10, %c0_11, %c0_12] : memref<1x32x1xf32, #tpu.memory_space<vmem>>, vector<1x32x1xf32>
    %25 = vector.broadcast %24 : vector<1x32x1xf32> to vector<1x32x256xf32>
    %26 = arith.addf %23, %25 : vector<1x32x256xf32>
    %c0_13 = arith.constant 0 : index
    %c0_14 = arith.constant 0 : index
    %c0_15 = arith.constant 0 : index
    %27 = vector.load %arg5[%c0_13, %c0_14, %c0_15] : memref<1x32x256xf32, #tpu.memory_space<vmem>>, vector<1x32x256xf32>
    tpu.vector_store %arg5[%c0_13, %c0_14, %c0_15], %26 {strides = array<i32>} : memref<1x32x256xf32, #tpu.memory_space<vmem>>, vector<1x32x256xf32>,
    return
  }
  func.func @transform_0(%arg0: i32, %arg1: i32) -> (i32, i32, i32) {
    %c0_i32 = arith.constant 0 : i32
    %c0_i32_0 = arith.constant 0 : i32
    return %arg0, %c0_i32, %arg1 : i32, i32, i32
  }
  func.func @transform_1(%arg0: i32, %arg1: i32) -> (i32, i32, i32) {
    %c0_i32 = arith.constant 0 : i32
    %c0_i32_0 = arith.constant 0 : i32
    %c0_i32_1 = arith.constant 0 : i32
    %c0_i32_2 = arith.constant 0 : i32
    return %c0_i32, %c0_i32_0, %c0_i32_1 : i32, i32, i32
  }
  func.func @transform_2(%arg0: i32, %arg1: i32) -> (i32, i32, i32) {
    %c0_i32 = arith.constant 0 : i32
    %c0_i32_0 = arith.constant 0 : i32
    %c0_i32_1 = arith.constant 0 : i32
    %c0_i32_2 = arith.constant 0 : i32
    return %c0_i32, %c0_i32_0, %c0_i32_1 : i32, i32, i32
  }
  func.func @transform_3(%arg0: i32, %arg1: i32) -> (i32, i32, i32) {
    %c0_i32 = arith.constant 0 : i32
    %c0_i32_0 = arith.constant 0 : i32
    return %arg0, %c0_i32, %arg1 : i32, i32, i32
  }
}

</mosaic_0001>

<llo_original>
// kernel: tpu_custom_call.1
$region0: #{tpu_custom_call.1}
  #allocation0 [shape = 'u32[]', space=smem, size = 0x4, offset = 0x4, fixed_abs, tag = 'smem constant byte address 0x4 - core index']
  #allocation1 [shape = 'u32[144,128]{1,0:T(1,128)}', space=vmem, size = 0x12000, scoped, tag = 'internal scratch']
  %s0 = inlined_call_operand.hbm [shape: f32[2,32,256], index: 0, kind: input, shape index: {}]
  %s1 = inlined_call_operand.vmem [shape: f32[1,32,1], index: 1, kind: input, shape index: {}]
  %s2 = inlined_call_operand.vmem [shape: f32[1,32,1], index: 2, kind: input, shape index: {}]
  %s3 = inlined_call_operand.hbm [shape: f32[2,32,256], index: 3, kind: output, shape index: {}]
  %s4 = sld [smem:[#allocation0]]
  $region49: #{tpu_custom_call.1} parent=0
    _
  %s6 = ssub.s32 1, %s4
  %s7 = scalar_select 0, %s6, %s4
  $region1: #{tpu_custom_call.1} parent=0
    #allocation2 [shape = 'u8[65536]{0}', space=vmem, size = 0x10000, scoped, tag = 'input window, operand 0']
    #allocation3 [shape = 's32[2]{0}', space=sflag, size = 0x8, scoped, tag = 'scoped memory for tpu_custom_call.1']
    #allocation4 [shape = 's32[2]{0}', space=sflag, size = 0x8, scoped, tag = 'scoped memory for tpu_custom_call.1']
    #allocation5 [shape = 'u8[65536]{0}', space=vmem, size = 0x10000, scoped, tag = 'output window, operand 0']
    %8 = vsyncpa [#allocation3], 0
    %s9 = scalar_lea.sflag [#allocation3], 1
    %10 = vsyncpa %s9, 0
    %11 = vsyncpa [#allocation4], 0
    %s12 = scalar_lea.sflag [#allocation4], 1
    %13 = vsyncpa %s12, 0
    loop: start=0, step=1, limit=4
    $region2: #{tpu_custom_call.1} parent=1 // loop_pre_header
      _
    $region3: #{tpu_custom_call.1} parent=1 // loop_header
      %s15 = sphi 0, %s19
      %p16 = scmp.ge.s32.totalorder %s15, 4
      %s22 = sphi 0, %s34
      %s23 = sphi 0, %s30
      %s24 = sphi 0, %s22
      %s25 = sphi 0, %s23
      %s26 = sphi 0, %s24
      %s27 = sphi 0, %s25
      %s39 = sphi 0, %s41
      %s42 = sphi 0, %s39
      %s43 = sphi 0, %s42
      %s59 = sphi 0, %s43
      %s63 = sphi 0, %s63
      %s65 = sphi 0, %s63
      %s66 = sphi 0, %s65
      %s80 = sphi 0, %s66
      %s84 = sphi 0, %s84
      %s86 = sphi 0, %s84
      %s87 = sphi 0, %s86
      %s101 = sphi 0, %s87
      %s109 = sphi 0, %s111
      %s112 = sphi 0, %s109
      %s113 = sphi 0, %s112
      %s129 = sphi 0, %s113
    $region4: #{tpu_custom_call.1} parent=1 // loop_header_branch
      %18 = sbr.rel (%p16) target = $region8
    $region5: #{tpu_custom_call.1} parent=1 // loop_body
      %s20 = ssub.s32 %s15, 1
      %s21 = ssub.s32 %s15, 2
      %s28 = sadd.s32 1, %s23
      %p29 = scmp.ge.s32.totalorder %s28, 1
      %s30 = scalar_select %p29, 0, %s28
      %s31 = sadd.s32 1, %s22
      %s32 = scalar_select %p29, %s31, %s22
      %p33 = scmp.ge.s32.totalorder %s32, 2
      %s34 = scalar_select %p33, 0, %s32
      %s35 = ssub.s32 %s22, %s34
      %s36 = ssub.s32 %s23, %s30
      %s37 = sor.u32 %s35, %s36
      %p38 = scmp.eq.s32.totalorder %s37, 0
      %s40 = sadd.s32 %s39, 1
      %s41 = scalar_select %p38, %s39, %s40
      %p44 = pneg %p38
      %p45 = scmp.eq.s32.totalorder %s15, 1
      %p46 = por %p44, %p45
      %p47 = scmp.ne.s32.totalorder %s39, %s42
      %p48 = scmp.eq.s32.totalorder %s15, 0
      %p49 = por %p47, %p48
      %p50 = scmp.ne.s32.totalorder %s39, %s42
      %p51 = scmp.eq.s32.totalorder %s20, 1
      %p52 = por %p50, %p51
      %p53 = scmp.ne.s32.totalorder %s42, %s43
      %p54 = scmp.eq.s32.totalorder %s20, 0
      %p55 = por %p53, %p54
      %p56 = scmp.ne.s32.totalorder %s42, %s43
      %p57 = scmp.eq.s32.totalorder %s21, 1
      %p58 = por %p56, %p57
      %p60 = scmp.ne.s32.totalorder %s43, %s59
      %p61 = scmp.eq.s32.totalorder %s21, 0
      %p62 = por %p60, %p61
      %s64 = sadd.s32 %s63, 1
      %p67 = scmp.eq.s32.totalorder %s15, 1
      %p68 = scmp.ne.s32.totalorder %s63, %s65
      %p69 = scmp.eq.s32.totalorder %s15, 0
      %p70 = por %p68, %p69
      %p71 = scmp.ne.s32.totalorder %s63, %s65
      %p72 = scmp.eq.s32.totalorder %s20, 1
      %p73 = por %p71, %p72
      %p74 = scmp.ne.s32.totalorder %s65, %s66
      %p75 = scmp.eq.s32.totalorder %s20, 0
      %p76 = por %p74, %p75
      %p77 = scmp.ne.s32.totalorder %s65, %s66
      %p78 = scmp.eq.s32.totalorder %s21, 1
      %p79 = por %p77, %p78
      %p81 = scmp.ne.s32.totalorder %s66, %s80
      %p82 = scmp.eq.s32.totalorder %s21, 0
      %p83 = por %p81, %p82
      %s85 = sadd.s32 %s84, 1
      %p88 = scmp.eq.s32.totalorder %s15, 1
      %p89 = scmp.ne.s32.totalorder %s84, %s86
      %p90 = scmp.eq.s32.totalorder %s15, 0
      %p91 = por %p89, %p90
      %p92 = scmp.ne.s32.totalorder %s84, %s86
      %p93 = scmp.eq.s32.totalorder %s20, 1
      %p94 = por %p92, %p93
      %p95 = scmp.ne.s32.totalorder %s86, %s87
      %p96 = scmp.eq.s32.totalorder %s20, 0
      %p97 = por %p95, %p96
      %p98 = scmp.ne.s32.totalorder %s86, %s87
      %p99 = scmp.eq.s32.totalorder %s21, 1
      %p100 = por %p98, %p99
      %p102 = scmp.ne.s32.totalorder %s87, %s101
      %p103 = scmp.eq.s32.totalorder %s21, 0
      %p104 = por %p102, %p103
      %s105 = ssub.s32 %s22, %s34
      %s106 = ssub.s32 %s23, %s30
      %s107 = sor.u32 %s105, %s106
      %p108 = scmp.eq.s32.totalorder %s107, 0
      %s110 = sadd.s32 %s109, 1
      %s111 = scalar_select %p108, %s109, %s110
      %p114 = pneg %p108
      %p115 = scmp.eq.s32.totalorder %s15, 1
      %p116 = por %p114, %p115
      %p117 = scmp.ne.s32.totalorder %s109, %s112
      %p118 = scmp.eq.s32.totalorder %s15, 0
      %p119 = por %p117, %p118
      %p120 = scmp.ne.s32.totalorder %s109, %s112
      %p121 = scmp.eq.s32.totalorder %s20, 1
      %p122 = por %p120, %p121
      %p123 = scmp.ne.s32.totalorder %s112, %s113
      %p124 = scmp.eq.s32.totalorder %s20, 0
      %p125 = por %p123, %p124
      %p126 = scmp.ne.s32.totalorder %s112, %s113
      %p127 = scmp.eq.s32.totalorder %s21, 1
      %p128 = por %p126, %p127
      %p130 = scmp.ne.s32.totalorder %s113, %s129
      %p131 = scmp.eq.s32.totalorder %s21, 0
      %p132 = por %p130, %p131
      %p133 = scmp.le.s32.totalorder 1, %s15
      %p134 = scmp.lt.s32.totalorder %s15, 3
      %p135 = pnand %p133, %p134
      %p136 = pneg %p135
      // Predicated region
      $region9: #{tpu_custom_call.1} parent=5 // pred_check
        _
      $region10: #{tpu_custom_call.1} parent=5 // pred_check_branch
        %138 = sbr.rel (%p135) target = $region12
      $region11: #{tpu_custom_call.1} parent=5 // pred_region
        %s139 = ssub.s32 %s15, 1
        // Predicated region
        $region13: #{tpu_custom_call.1} parent=11 // pred_check
          %p140 = pneg %p76
        $region14: #{tpu_custom_call.1} parent=11 // pred_check_branch
          %142 = sbr.rel (%p140) target = $region16
        $region15: #{tpu_custom_call.1} parent=11 // pred_region
          _
        $region16: #{tpu_custom_call.1} parent=11 // pred_fallthru
          _
        // Predicated region
        $region17: #{tpu_custom_call.1} parent=11 // pred_check
          %p143 = pneg %p97
        $region18: #{tpu_custom_call.1} parent=11 // pred_check_branch
          %145 = sbr.rel (%p143) target = $region20
        $region19: #{tpu_custom_call.1} parent=11 // pred_region
          _
        $region20: #{tpu_custom_call.1} parent=11 // pred_fallthru
          _
      $region12: #{tpu_custom_call.1} parent=5 // pred_fallthru
        _
      %p146 = scmp.lt.s32.totalorder %s15, 2
      // Predicated region
      $region21: #{tpu_custom_call.1} parent=5 // pred_check
        %p147 = pneg %p146
      $region22: #{tpu_custom_call.1} parent=5 // pred_check_branch
        %149 = sbr.rel (%p147) target = $region24
      $region23: #{tpu_custom_call.1} parent=5 // pred_region
        // Predicated region
        $region25: #{tpu_custom_call.1} parent=23 // pred_check
          %p150 = pneg %p49
        $region26: #{tpu_custom_call.1} parent=23 // pred_check_branch
          %152 = sbr.rel (%p150) target = $region28
        $region27: #{tpu_custom_call.1} parent=23 // pred_region
          %s153 = sand.u32 %s39, 1
          %s154 = scalar_lea.sflag [#allocation3], %s153
          %s155 = sand.u32 %s39, 1
          %s156 = smul.addr %s155, 64
          %s157 = scalar_lea.vmem [#allocation2], %s156
          %s158 = smul.u32 2, %s23
          %s160 = ssub.s32 1024, 1024
          %161 = vsyncadd %s154, %s160
          %s162 = smul.addr %s22, 8
          %s163 = sadd.s32 %s158, %s162
          %s164 = smul.addr %s163, 128
          %s165 = scalar_lea.hbm %s0, %s164
          %s166 = sshll.u32 %s157, 4
          %s167 = int_to_ptr.vmem [resolvable:$true] %s166
          %172 = dma.hbm_to_vmem [thread:$0]  %s165, 1024, %s167, %s154, 256, 256, 16
        $region28: #{tpu_custom_call.1} parent=23 // pred_fallthru
          _
      $region24: #{tpu_custom_call.1} parent=5 // pred_fallthru
        _
      %p173 = scmp.le.s32.totalorder 1, %s15
      %p174 = scmp.lt.s32.totalorder %s15, 3
      %p175 = pnand %p173, %p174
      %p176 = pneg %p175
      // Predicated region
      $region29: #{tpu_custom_call.1} parent=5 // pred_check
        _
      $region30: #{tpu_custom_call.1} parent=5 // pred_check_branch
        %178 = sbr.rel (%p175) target = $region32
      $region31: #{tpu_custom_call.1} parent=5 // pred_region
        %s179 = ssub.s32 %s15, 1
        %s180 = sand.u32 %s42, 1
        %s181 = scalar_lea.sflag [#allocation3], %s180
        %s182 = sand.u32 %s42, 1
        %s183 = smul.addr %s182, 64
        %s184 = scalar_lea.vmem [#allocation2], %s183
        // Predicated region
        $region33: #{tpu_custom_call.1} parent=31 // pred_check
          %p185 = pneg %p55
        $region34: #{tpu_custom_call.1} parent=31 // pred_check_branch
          %187 = sbr.rel (%p185) target = $region36
        $region35: #{tpu_custom_call.1} parent=31 // pred_region
          %188 = dma.done %s181, 1024
        $region36: #{tpu_custom_call.1} parent=31 // pred_fallthru
          _
        %s189 = sand.u32 %s42, 1
        %s190 = scalar_lea.sflag [#allocation3], %s189
        %s191 = sand.u32 %s42, 1
        %s192 = smul.addr %s191, 64
        %s193 = scalar_lea.vmem [#allocation2], %s192
        %p194 = pneg %p55
        %p195 = pneg %p52
        %p196 = pneg %p76
        %p197 = pneg %p73
        %p198 = pneg %p97
        %p199 = pneg %p94
        %p200 = pneg %p125
        %p201 = pneg %p122
        %s202 = sand.u32 %s112, 1
        %s203 = scalar_lea.sflag [#allocation4], %s202
        %s204 = sand.u32 %s112, 1
        %s205 = smul.addr %s204, 64
        %s206 = scalar_lea.vmem [#allocation5], %s205
        %s207 = smul.u32 2, %s25
        %s208 = smul.u32 2, %s25
        %v209 = vld [vmem:[%s184] sm:$0xff]
        %v210 = vld [vmem:[%s184 + $0x8] sm:$0xff]
        %v211 = vld [vmem:[%s184 + $0x10] sm:$0xff]
        %v212 = vld [vmem:[%s184 + $0x18] sm:$0xff]
        %v213 = vld [vmem:[%s184 + $0x20] sm:$0xff]
        %v214 = vld [vmem:[%s184 + $0x28] sm:$0xff]
        %v215 = vld [vmem:[%s184 + $0x30] sm:$0xff]
        %v216 = vld [vmem:[%s184 + $0x38] sm:$0xff]
        %v217 = vadd.f32 %v209, %v211
        %v218 = vadd.f32 %v217, %v213
        %v219 = vadd.f32 %v218, %v215
        %v220 = vrot.slane %v219, 4
        %v221 = vadd.f32 %v219, %v220
        %v222 = vrot.slane %v221, 2
        %v223 = vadd.f32 %v221, %v222
        %v224 = vrot.slane %v223, 1
        %v225 = vadd.f32 %v223, %v224
        %v226 = vadd.f32 %v210, %v212
        %v227 = vadd.f32 %v226, %v214
        %v228 = vadd.f32 %v227, %v216
        %v229 = vrot.slane %v228, 4
        %v230 = vadd.f32 %v228, %v229
        %v231 = vrot.slane %v230, 2
        %v232 = vadd.f32 %v230, %v231
        %v233 = vrot.slane %v232, 1
        %v234 = vadd.f32 %v232, %v233
        %v235 = vmul.f32 %v209, %v209
        %v236 = vmul.f32 %v210, %v210
        %v237 = vmul.f32 %v211, %v211
        %v238 = vmul.f32 %v212, %v212
        %v239 = vmul.f32 %v213, %v213
        %v240 = vmul.f32 %v214, %v214
        %v241 = vmul.f32 %v215, %v215
        %v242 = vmul.f32 %v216, %v216
        %v243 = vadd.f32 %v235, %v237
        %v244 = vadd.f32 %v243, %v239
        %v245 = vadd.f32 %v244, %v241
        %v246 = vrot.slane %v245, 4
        %v247 = vadd.f32 %v245, %v246
        %v248 = vrot.slane %v247, 2
        %v249 = vadd.f32 %v247, %v248
        %v250 = vrot.slane %v249, 1
        %v251 = vadd.f32 %v249, %v250
        %v252 = vadd.f32 %v236, %v238
        %v253 = vadd.f32 %v252, %v240
        %v254 = vadd.f32 %v253, %v242
        %v255 = vrot.slane %v254, 4
        %v256 = vadd.f32 %v254, %v255
        %v257 = vrot.slane %v256, 2
        %v258 = vadd.f32 %v256, %v257
        %v259 = vrot.slane %v258, 1
        %v260 = vadd.f32 %v258, %v259
        %v261 = vmul.f32 %v225, 0.03125
        %v262 = vmul.f32 %v234, 0.03125
        %v263 = vmul.f32 %v251, 0.03125
        %v264 = vmul.f32 %v260, 0.03125
        %v265 = vmul.f32 %v261, %v261
        %v266 = vmul.f32 %v262, %v262
        %v267 = vsub.f32 %v263, %v265
        %v268 = vsub.f32 %v264, %v266
        %v269 = vmax.f32 %v267, 0.0
        %v270 = vmax.f32 %v268, 0.0
        %v271 = vsub.f32 %v209, %v261
        %v272 = vsub.f32 %v210, %v262
        %v273 = vsub.f32 %v211, %v261
        %v274 = vsub.f32 %v212, %v262
        %v275 = vsub.f32 %v213, %v261
        %v276 = vsub.f32 %v214, %v262
        %v277 = vsub.f32 %v215, %v261
        %v278 = vsub.f32 %v216, %v262
        %v279 = vadd.f32 %v269, 1e-06
        %v280 = vadd.f32 %v270, 1e-06
        %v281 = vrsqrt.pop %v279
        %v282 = vrsqrt.pop %v280
        %v283 = vmul.f32 %v271, %v281
        %v284 = vmul.f32 %v272, %v282
        %v285 = vmul.f32 %v273, %v281
        %v286 = vmul.f32 %v274, %v282
        %v287 = vmul.f32 %v275, %v281
        %v288 = vmul.f32 %v276, %v282
        %v289 = vmul.f32 %v277, %v281
        %v290 = vmul.f32 %v278, %v282
        %v291 = vld [vmem:[%s1] sm:$0xff]
        %v292 = vld [vmem:[%s1 + $0x8] sm:$0xff]
        %v293 = vld [vmem:[%s1 + $0x10] sm:$0xff]
        %v294 = vld [vmem:[%s1 + $0x18] sm:$0xff]
        %296 = vset.pattern.permute.xlu0 0
        %297 = vperm.xlu0 %296, %v291
        %v298 = vpop.permute.xlu0 %297
        %301 = vset.pattern.permute.xlu0 0
        %302 = vperm.xlu0 %301, %v292
        %v303 = vpop.permute.xlu0 %302
        %306 = vset.pattern.permute.xlu0 0
        %307 = vperm.xlu0 %306, %v293
        %v308 = vpop.permute.xlu0 %307
        %311 = vset.pattern.permute.xlu0 0
        %312 = vperm.xlu0 %311, %v294
        %v313 = vpop.permute.xlu0 %312
        %v315 = vmul.f32 %v298, %v283
        %v316 = vmul.f32 %v298, %v284
        %v317 = vmul.f32 %v303, %v285
        %v318 = vmul.f32 %v303, %v286
        %v319 = vmul.f32 %v308, %v287
        %v320 = vmul.f32 %v308, %v288
        %v321 = vmul.f32 %v313, %v289
        %v322 = vmul.f32 %v313, %v290
        %v323 = vld [vmem:[%s2] sm:$0xff]
        %v324 = vld [vmem:[%s2 + $0x8] sm:$0xff]
        %v325 = vld [vmem:[%s2 + $0x10] sm:$0xff]
        %v326 = vld [vmem:[%s2 + $0x18] sm:$0xff]
        %328 = vset.pattern.permute.xlu0 0
        %329 = vperm.xlu0 %328, %v323
        %v330 = vpop.permute.xlu0 %329
        %333 = vset.pattern.permute.xlu0 0
        %334 = vperm.xlu0 %333, %v324
        %v335 = vpop.permute.xlu0 %334
        %338 = vset.pattern.permute.xlu0 0
        %339 = vperm.xlu0 %338, %v325
        %v340 = vpop.permute.xlu0 %339
        %343 = vset.pattern.permute.xlu0 0
        %344 = vperm.xlu0 %343, %v326
        %v345 = vpop.permute.xlu0 %344
        %v347 = vadd.f32 %v315, %v330
        %v348 = vadd.f32 %v316, %v330
        %v349 = vadd.f32 %v317, %v335
        %v350 = vadd.f32 %v318, %v335
        %v351 = vadd.f32 %v319, %v340
        %v352 = vadd.f32 %v320, %v340
        %v353 = vadd.f32 %v321, %v345
        %v354 = vadd.f32 %v322, %v345
        %355 = vst [vmem:[%s206] sm:$0xff] %v347
        %356 = vst [vmem:[%s206 + $0x8] sm:$0xff] %v348
        %357 = vst [vmem:[%s206 + $0x10] sm:$0xff] %v349
        %358 = vst [vmem:[%s206 + $0x18] sm:$0xff] %v350
        %359 = vst [vmem:[%s206 + $0x20] sm:$0xff] %v351
        %360 = vst [vmem:[%s206 + $0x28] sm:$0xff] %v352
        %361 = vst [vmem:[%s206 + $0x30] sm:$0xff] %v353
        %362 = vst [vmem:[%s206 + $0x38] sm:$0xff] %v354
        %s363 = sand.u32 %s112, 1
        %s364 = scalar_lea.sflag [#allocation4], %s363
        %s365 = sand.u32 %s112, 1
        %s366 = smul.addr %s365, 64
        %s367 = scalar_lea.vmem [#allocation5], %s366
        // Predicated region
        $region37: #{tpu_custom_call.1} parent=31 // pred_check
          %p368 = pneg %p122
        $region38: #{tpu_custom_call.1} parent=31 // pred_check_branch
          %370 = sbr.rel (%p368) target = $region40
        $region39: #{tpu_custom_call.1} parent=31 // pred_region
          %s371 = smul.u32 2, %s25
          %s373 = ssub.s32 1024, 1024
          %374 = vsyncadd %s364, %s373
          %s375 = smul.addr %s24, 8
          %s376 = sadd.s32 %s371, %s375
          %s377 = smul.addr %s376, 128
          %s378 = scalar_lea.hbm %s3, %s377
          %s379 = sshll.u32 %s367, 4
          %s380 = int_to_ptr.vmem [resolvable:$true] %s379
          %385 = dma.vmem_to_hbm [thread:$0]  %s380, 1024, %s378, %s364, 256, 256, 16
        $region40: #{tpu_custom_call.1} parent=31 // pred_fallthru
          _
      $region32: #{tpu_custom_call.1} parent=5 // pred_fallthru
        _
      %p386 = scmp.le.s32.totalorder 2, %s15
      // Predicated region
      $region41: #{tpu_custom_call.1} parent=5 // pred_check
        %p387 = pneg %p386
      $region42: #{tpu_custom_call.1} parent=5 // pred_check_branch
        %389 = sbr.rel (%p387) target = $region44
      $region43: #{tpu_custom_call.1} parent=5 // pred_region
        %s390 = ssub.s32 %s15, 2
        // Predicated region
        $region45: #{tpu_custom_call.1} parent=43 // pred_check
          %p391 = pneg %p128
        $region46: #{tpu_custom_call.1} parent=43 // pred_check_branch
          %393 = sbr.rel (%p391) target = $region48
        $region47: #{tpu_custom_call.1} parent=43 // pred_region
          %s394 = sand.u32 %s113, 1
          %s395 = scalar_lea.sflag [#allocation4], %s394
          %s396 = sand.u32 %s113, 1
          %s397 = smul.addr %s396, 64
          %s398 = scalar_lea.vmem [#allocation5], %s397
          %399 = dma.done %s395, 1024
        $region48: #{tpu_custom_call.1} parent=43 // pred_fallthru
          _
      $region44: #{tpu_custom_call.1} parent=5 // pred_fallthru
        _
    $region6: #{tpu_custom_call.1} parent=1 // loop_footer
      %s19 = sadd.s32 1, %s15
    $region7: #{tpu_custom_call.1} parent=1 // loop_footer_branch
      %14 = sbr.rel target = $region3
    $region8: #{tpu_custom_call.1} parent=1 // loop_exit
      _
    %400 = vsyncpa [#allocation3], 1
    %s401 = scalar_lea.sflag [#allocation3], 1
    %402 = vsyncpa %s401, 1
    %403 = vsyncpa [#allocation4], 1
    %s404 = scalar_lea.sflag [#allocation4], 1
    %405 = vsyncpa %s404, 1

</llo_original>
